<compile_context>
chip_gen: v7x
topology: tpu7x:2x2x1
jax: 0.10.0
libtpu: 0.0.40
codegen_flags: <defaults>
</compile_context>

<pallas_src>
import functools

import jax
import jax.numpy as jnp
from jax.experimental import pallas as pl
from jax.experimental.pallas import tpu as pltpu


def _round_up(x, m):
    return ((x + m - 1) // m) * m


def _bert_embedding_kernel(seed_ref, x_ref, w_ref, pe_ref, out_ref, *,
                           dropout_p, deterministic):
    # TokenEmbedding (circular conv1d) as a single (Bblk, K) x (K, L*E) MXU
    # matmul against the banded weight; f32 accumulation.
    tok = jnp.dot(x_ref[...], w_ref[...], preferred_element_type=jnp.float32)

    # + sinusoidal PE: (1, L*E) f32 row, broadcast over the batch rows.
    emb = tok + pe_ref[...]

    # Dropout (identity in eval / deterministic mode).  The 1/(1-p) scale is
    # already folded into w_ref / pe_ref by the wrapper.
    if (not deterministic) and dropout_p > 0.0:
        pltpu.prng_seed(seed_ref[0], pl.program_id(0))   # per-step reseed
        bits = pltpu.prng_random_bits(emb.shape)
        if bits.dtype != jnp.uint32:
            bits = pltpu.bitcast(bits, jnp.uint32)
        # keep iff bits >= p * 2^32  (integer threshold, no f32 convert chain)
        thresh = jnp.uint32(min(int(dropout_p * 4294967296.0), 4294967295))
        emb = jnp.where(bits >= thresh, emb, 0.0)

    out_ref[...] = emb.astype(out_ref.dtype)


def bert_embedding_forward(sequence, conv_w, pe, *, dropout_p=0.1,
                           deterministic=True, seed=0,
                           out_dtype=jnp.bfloat16):
    """sequence: (B, L, C) f32; conv_w: (E, C, 3) f32 (torch Conv1d layout);
    pe: (max_len, E) f32.  Returns (embedding (B, L, E), mask (B, L)).

    Targets the module's short-sequence regime (max_len=7): the conv is folded
    into one dense (K, L*E) weight, so keep L small (<= a few hundred)."""
    B, L, C = sequence.shape
    E, Cw, Kk = conv_w.shape
    assert Cw == C and Kk == 3
    max_len, Ep = pe.shape
    assert Ep == E and L <= max_len
    # dropout_p == 1.0 would make the inverted scale infinite.
    assert 0.0 <= float(dropout_p) < 1.0, "dropout_p must be in [0, 1)"

    K = (L + 2) * C          # haloed feature width (circular pad of 1 row each side)
    N = L * E                # lane-dense output width per batch row

    # ---- circular halo + flatten (contiguous reshape) + bf16 cast ----
    x_halo = jnp.concatenate(
        [sequence[:, L - 1:L], sequence, sequence[:, 0:1]], axis=1)   # (B, L+2, C)
    x_flat = x_halo.reshape(B, K).astype(jnp.bfloat16)                # (B, K)

    # ---- banded conv weight: W[(l+k)*C + c, l*E + e] = conv_w[e, c, k] ----
    # (Small one-time build; in production precompute once per weight update.)
    w_t = jnp.transpose(conv_w, (2, 1, 0))                            # (3, C, E)
    w_big = jnp.zeros((K, N), jnp.float32)
    for l in range(L):
        for k in range(3):
            w_big = w_big.at[(l + k) * C:(l + k + 1) * C,
                             l * E:(l + 1) * E].set(w_t[k])

    pe_row = pe[:L].reshape(1, N).astype(jnp.float32)                 # (1, L*E) f32
    if (not deterministic) and dropout_p > 0.0:
        scale = 1.0 / (1.0 - float(dropout_p))
        w_big = w_big * scale       # fold inverted-dropout scale (KB-scale, free)
        pe_row = pe_row * scale
    w_big = w_big.astype(jnp.bfloat16)

    out_bytes = jnp.dtype(out_dtype).itemsize

    # ---- batch block: target >= ~2 MiB of output per grid step ----
    bblk = _round_up(max(1, (2 * 1024 * 1024) // max(1, N * out_bytes)), 8)
    bblk = min(bblk, B)   # == B (full dim) when B is small; else multiple of 8

    try:
        vmem_cap = int(pltpu.get_tpu_info().vmem_capacity_bytes)
    except Exception:          # pragma: no cover - conservative fallback (v7x per-TC)
        vmem_cap = 64 * 1024 * 1024

    def _vmem_need(nb):
        # double-buffered x / out tiles + resident (but 2x-allocated) weight + PE
        return (2 * nb * K * 2 + 2 * nb * N * out_bytes
                + 2 * K * N * 2 + 2 * N * 4)

    while bblk > 8 and _vmem_need(bblk) > vmem_cap // 2:
        bblk = max(8, _round_up(bblk // 2, 8))

    vmem_limit = int(min(0.8 * vmem_cap,
                         max(16 * 1024 * 1024, 2 * _vmem_need(bblk))))

    num_b = (B + bblk - 1) // bblk           # ragged last block masked by Pallas

    cost = pl.CostEstimate(
        flops=2 * B * K * N,
        transcendentals=0,
        bytes_accessed=B * K * 2 + K * N * 2 + N * 4 + B * N * out_bytes,
    )

    kernel = functools.partial(_bert_embedding_kernel,
                               dropout_p=float(dropout_p),
                               deterministic=bool(deterministic))
    seed_arr = jnp.asarray([seed], dtype=jnp.int32)

    out_flat = pl.pallas_call(
        kernel,
        out_shape=jax.ShapeDtypeStruct((B, N), out_dtype),
        grid_spec=pltpu.PrefetchScalarGridSpec(
            num_scalar_prefetch=1,           # dropout seed lives in SMEM
            grid=(num_b,),
            in_specs=[
                pl.BlockSpec((bblk, K), lambda b, seed: (b, 0)),   # activations
                pl.BlockSpec((K, N), lambda b, seed: (0, 0)),      # resident weight
                pl.BlockSpec((1, N), lambda b, seed: (0, 0)),      # resident PE row
            ],
            out_specs=pl.BlockSpec((bblk, N), lambda b, seed: (b, 0)),
        ),
        compiler_params=pltpu.CompilerParams(
            dimension_semantics=("parallel",),
            vmem_limit_bytes=vmem_limit,
        ),
        cost_estimate=cost,
    )(seed_arr, x_flat, w_big, pe_row)

    out = out_flat.reshape(B, L, E)          # contiguous reshape, no copy pass
    # padding mask ("any input channel nonzero"), computed wrapper-side so the
    # kernel keeps a single lane-dense output stream.
    mask = (jnp.abs(sequence).sum(axis=-1) > 0.0).astype(jnp.float32)
    return out, mask


def sinusoidal_pe(max_len, d_model):
    pos = jnp.arange(max_len, dtype=jnp.float32)[:, None]
    i = jnp.arange(0, d_model, 2, dtype=jnp.float32)[None, :]
    div = jnp.exp(-(jnp.log(10000.0)) * i / d_model)
    ang = pos * div
    pe = jnp.zeros((max_len, d_model), jnp.float32)
    pe = pe.at[:, 0::2].set(jnp.sin(ang))
    pe = pe.at[:, 1::2].set(jnp.cos(ang))
    return pe


if __name__ == "__main__":
    # shapes implied by the module defaults (max_len=7, dropout=0.1);
    # E=128 keeps the per-position output lane-dense.
    B, L, C, E, MAX_LEN = 2, 7, 4, 128, 7

    key = jax.random.PRNGKey(0)
    kx, kw = jax.random.split(key)
    sequence = jax.random.normal(kx, (B, L, C), dtype=jnp.float32)
    sequence = sequence.at[1, L - 1, :].set(0.0)   # one "padding" token for the mask

    conv_w = jax.random.normal(kw, (E, C, 3), dtype=jnp.float32) * (2.0 / (C * 3)) ** 0.5
    pe = sinusoidal_pe(MAX_LEN, E)

    # ---- eval-mode forward (dropout = identity), f32 output for the check ----
    out, mask = bert_embedding_forward(sequence, conv_w, pe, dropout_p=0.1,
                                       deterministic=True, out_dtype=jnp.float32)
    jax.block_until_ready((out, mask))

    # plain-JAX reference: circular conv1d token embedding + sinusoidal PE
    xh = jnp.concatenate([sequence[:, L - 1:L], sequence, sequence[:, 0:1]], axis=1)
    w_t = jnp.transpose(conv_w, (2, 1, 0))        # (3, C, E)
    tok_ref = sum(jnp.einsum('blc,ce->ble', xh[:, k:k + L], w_t[k],
                             precision=jax.lax.Precision.HIGHEST) for k in range(3))
    ref = tok_ref + pe[None, :L]
    # tolerance covers the deliberate bf16 activation/weight quantization
    assert jnp.allclose(out, ref, atol=5e-2, rtol=5e-2), "embedding mismatch"
    ref_mask = (jnp.abs(sequence).sum(-1) > 0).astype(jnp.float32)
    assert jnp.array_equal(mask, ref_mask), "mask mismatch"

    # ---- default bf16-output path (halves the dominant HBM write stream) ----
    out_bf16, _ = bert_embedding_forward(sequence, conv_w, pe, dropout_p=0.1,
                                         deterministic=True)
    jax.block_until_ready(out_bf16)
    assert jnp.allclose(out_bf16.astype(jnp.float32), ref, atol=1e-1, rtol=5e-2), \
        "bf16 embedding mismatch"

    # ---- training-mode forward (TPU hardware PRNG dropout) ----
    if jax.default_backend() == "tpu":
        try:
            out_tr, _ = bert_embedding_forward(sequence, conv_w, pe, dropout_p=0.1,
                                               deterministic=False, seed=123)
            jax.block_until_ready(out_tr)
            assert bool(jnp.isfinite(out_tr.astype(jnp.float32)).all())
        except NotImplementedError:
            # interpret-mode environments lack prng lowering; deterministic
            # paths above already validated the kernel.
            pass

    print("KERNEL_OK")
</pallas_src>

<mosaic_0001>
module attributes {stable_mosaic.version = 11 : i64} {
  func.func @_bert_embedding_kernel(%arg0: i32, %arg1: memref<1xi32, #tpu.memory_space<smem>>, %arg2: memref<2x36xbf16, #tpu.memory_space<vmem>>, %arg3: memref<36x896xbf16, #tpu.memory_space<vmem>>, %arg4: memref<1x896xf32, #tpu.memory_space<vmem>>, %arg5: memref<2x896xf32, #tpu.memory_space<vmem>>) attributes {dimension_semantics = [#tpu.dimension_semantics<parallel>], iteration_bounds = array<i64: 1>, scalar_prefetch = 1 : i64, scratch_operands = 0 : i64, tpu.core_type = #tpu.core_type<tc>, window_params = [{transform_indices = @transform_0, window_bounds = array<i64: 2, 36>}, {pipeline_mode = #tpu.pipeline_mode<synchronous>, transform_indices = @transform_1, window_bounds = array<i64: 36, 896>}, {pipeline_mode = #tpu.pipeline_mode<synchronous>, transform_indices = @transform_2, window_bounds = array<i64: 1, 896>}, {transform_indices = @transform_3, window_bounds = array<i64: 2, 896>}]} {
    %c0 = arith.constant 0 : index
    %c0_0 = arith.constant 0 : index
    %0 = vector.load %arg2[%c0, %c0_0] : memref<2x36xbf16, #tpu.memory_space<vmem>>, vector<2x36xbf16>
    %c0_1 = arith.constant 0 : index
    %c0_2 = arith.constant 0 : index
    %1 = vector.load %arg3[%c0_1, %c0_2] : memref<36x896xbf16, #tpu.memory_space<vmem>>, vector<36x896xbf16>
    %cst = arith.constant dense<0.000000e+00> : vector<2x896xf32>
    %2 = tpu.matmul %0, %1, %cst {dimension_numbers = #tpu.dot_dimension_numbers<[1], [0], [0], [1], [0, 0, 1, 1], [], []>} : vector<2x36xbf16>, vector<36x896xbf16>, vector<2x896xf32> -> vector<2x896xf32>
    %c0_3 = arith.constant 0 : index
    %c0_4 = arith.constant 0 : index
    %3 = vector.load %arg4[%c0_3, %c0_4] : memref<1x896xf32, #tpu.memory_space<vmem>>, vector<1x896xf32>
    %4 = vector.broadcast %3 : vector<1x896xf32> to vector<2x896xf32>
    %5 = arith.addf %2, %4 : vector<2x896xf32>
    %c0_5 = arith.constant 0 : index
    %c0_6 = arith.constant 0 : index
    %6 = vector.load %arg5[%c0_5, %c0_6] : memref<2x896xf32, #tpu.memory_space<vmem>>, vector<2x896xf32>
    tpu.vector_store %arg5[%c0_5, %c0_6], %5 {strides = array<i32>} : memref<2x896xf32, #tpu.memory_space<vmem>>, vector<2x896xf32>,
    return
  }
  func.func @transform_0(%arg0: i32, %arg1: memref<1xi32, #tpu.memory_space<smem>>) -> (i32, i32) {
    %c0_i32 = arith.constant 0 : i32
    %c0_i32_0 = arith.constant 0 : i32
    return %arg0, %c0_i32 : i32, i32
  }
  func.func @transform_1(%arg0: i32, %arg1: memref<1xi32, #tpu.memory_space<smem>>) -> (i32, i32) {
    %c0_i32 = arith.constant 0 : i32
    %c0_i32_0 = arith.constant 0 : i32
    %c0_i32_1 = arith.constant 0 : i32
    return %c0_i32, %c0_i32_0 : i32, i32
  }
  func.func @transform_2(%arg0: i32, %arg1: memref<1xi32, #tpu.memory_space<smem>>) -> (i32, i32) {
    %c0_i32 = arith.constant 0 : i32
    %c0_i32_0 = arith.constant 0 : i32
    %c0_i32_1 = arith.constant 0 : i32
    return %c0_i32, %c0_i32_0 : i32, i32
  }
  func.func @transform_3(%arg0: i32, %arg1: memref<1xi32, #tpu.memory_space<smem>>) -> (i32, i32) {
    %c0_i32 = arith.constant 0 : i32
    %c0_i32_0 = arith.constant 0 : i32
    return %arg0, %c0_i32 : i32, i32
  }
}

</mosaic_0001>

<llo_original>
// kernel: tpu_custom_call.1
$region0: #{tpu_custom_call.1}
  #allocation0 [shape = 'u32[]', space=smem, size = 0x4, offset = 0x4, fixed_abs, tag = 'smem constant byte address 0x4 - core index']
  #allocation1 [shape = 'u32[144,128]{1,0:T(1,128)}', space=vmem, size = 0x12000, scoped, tag = 'internal scratch']
  #allocation2 [shape = 's32[1]{0}', space=sflag, size = 0x4, scoped, tag = 'scoped memory for tpu_custom_call.1']
  #allocation3 [shape = 's32[1]{0:T(128)S(6)}', space=smem, size = 0x200, scoped, tag = 'prefetched SMEM operand 0']
  %s0 = inlined_call_operand.<no memory space> [shape: s32[1], index: 0, kind: input, shape index: {}]
  %s1 = inlined_call_operand.vmem [shape: bf16[2,36], index: 1, kind: input, shape index: {}]
  %s2 = inlined_call_operand.hbm [shape: bf16[36,896], index: 2, kind: input, shape index: {}]
  %s3 = inlined_call_operand.vmem [shape: f32[1,896], index: 3, kind: input, shape index: {}]
  %s4 = inlined_call_operand.hbm [shape: f32[2,896], index: 4, kind: output, shape index: {}]
  %s5 = sld [smem:[#allocation0]]
  $region26: #{tpu_custom_call.1} parent=0
    _
  %s7 = ssub.s32 1, %s5
  %s8 = scalar_select 0, %s7, %s5
  %9 = sst [smem:[#allocation3]] %s0
  $region1: #{tpu_custom_call.1} parent=0
    #allocation4 [shape = 'u8[71680]{0}', space=vmem, size = 0x11800, scoped, tag = 'input window, operand 2, single buffered']
    #allocation5 [shape = 's32[1]{0}', space=sflag, size = 0x4, scoped, tag = 'scoped memory for tpu_custom_call.1']
    #allocation6 [shape = 's32[1]{0}', space=sflag, size = 0x4, scoped, tag = 'scoped memory for tpu_custom_call.1']
    #allocation7 [shape = 'u8[7168]{0}', space=vmem, size = 0x1c00, scoped, tag = 'output window, operand 0, single buffered']
    %10 = vsyncpa [#allocation5], 0
    %11 = vsyncpa [#allocation6], 0
    // Predicated region
    $region2: #{tpu_custom_call.1} parent=1 // pred_check
      _
    $region3: #{tpu_custom_call.1} parent=1 // pred_check_branch
      %13 = sbr.rel (0) target = $region5
    $region4: #{tpu_custom_call.1} parent=1 // pred_region
      _
    $region5: #{tpu_custom_call.1} parent=1 // pred_fallthru
      _
    // Predicated region
    $region6: #{tpu_custom_call.1} parent=1 // pred_check
      _
    $region7: #{tpu_custom_call.1} parent=1 // pred_check_branch
      %15 = sbr.rel (0) target = $region9
    $region8: #{tpu_custom_call.1} parent=1 // pred_region
      %s17 = ssub.s32 2240, 2240
      %18 = vsyncadd [#allocation5], %s17
      %s19 = sshll.u32 [#allocation4], 4
      %s20 = int_to_ptr.vmem [resolvable:$true] %s19
      %25 = dma.hbm_to_vmem [thread:$0]  %s2, 2240, %s20, [#allocation5], 448, 448, 28
    $region9: #{tpu_custom_call.1} parent=1 // pred_fallthru
      _
    // Predicated region
    $region10: #{tpu_custom_call.1} parent=1 // pred_check
      _
    $region11: #{tpu_custom_call.1} parent=1 // pred_check_branch
      %27 = sbr.rel (0) target = $region13
    $region12: #{tpu_custom_call.1} parent=1 // pred_region
      _
    $region13: #{tpu_custom_call.1} parent=1 // pred_fallthru
      _
    // Predicated region
    $region14: #{tpu_custom_call.1} parent=1 // pred_check
      _
    $region15: #{tpu_custom_call.1} parent=1 // pred_check_branch
      %29 = sbr.rel (0) target = $region17
    $region16: #{tpu_custom_call.1} parent=1 // pred_region
      %30 = dma.done [#allocation5], 2240
    $region17: #{tpu_custom_call.1} parent=1 // pred_fallthru
      _
    %v32 = vld [vmem:[%s1] sm:$0x1]
    %v33 = vld [vmem:[#allocation4] sm:$0xff]
    %v34 = vld [vmem:[#allocation4 + $0x8] sm:$0xff]
    %v35 = vld [vmem:[#allocation4 + $0x10] sm:$0xff]
    %v36 = vld [vmem:[#allocation4 + $0x18] sm:$0xf]
    %v37 = vld [vmem:[#allocation4 + $0x1c] sm:$0xff]
    %v38 = vld [vmem:[#allocation4 + $0x24] sm:$0xff]
    %v39 = vld [vmem:[#allocation4 + $0x2c] sm:$0xff]
    %v40 = vld [vmem:[#allocation4 + $0x34] sm:$0xf]
    %v41 = vld [vmem:[#allocation4 + $0x38] sm:$0xff]
    %v42 = vld [vmem:[#allocation4 + $0x40] sm:$0xff]
    %v43 = vld [vmem:[#allocation4 + $0x48] sm:$0xff]
    %v44 = vld [vmem:[#allocation4 + $0x50] sm:$0xf]
    %v45 = vld [vmem:[#allocation4 + $0x54] sm:$0xff]
    %v46 = vld [vmem:[#allocation4 + $0x5c] sm:$0xff]
    %v47 = vld [vmem:[#allocation4 + $0x64] sm:$0xff]
    %v48 = vld [vmem:[#allocation4 + $0x6c] sm:$0xf]
    %v49 = vld [vmem:[#allocation4 + $0x70] sm:$0x33]
    %v50 = vld [vmem:[#allocation4 + $0x78] sm:$0x33]
    %v51 = vld [vmem:[#allocation4 + $0x80] sm:$0x33]
    %v52 = vld [vmem:[#allocation4 + $0x88] sm:$0x3]
    %v53 = vld [vmem:[%s3] sm:$0xff]
    %v55 = vlaneseq
    %v56 = vshrl.u32 %v55, 7
    %v57 = vsub.s32 0, %v56
    %v58 = vrot.slane %v53, %v57
    %v59 = vlaneseq
    %v60 = vshrl.u32 %v59, 7
    %v61 = vsub.s32 1, %v60
    %v62 = vrot.slane %v53, %v61
    %v63 = vlaneseq
    %v64 = vshrl.u32 %v63, 7
    %v65 = vsub.s32 2, %v64
    %v66 = vrot.slane %v53, %v65
    %v67 = vlaneseq
    %v68 = vshrl.u32 %v67, 7
    %v69 = vsub.s32 3, %v68
    %v70 = vrot.slane %v53, %v69
    %v71 = vlaneseq
    %v72 = vshrl.u32 %v71, 7
    %v73 = vsub.s32 4, %v72
    %v74 = vrot.slane %v53, %v73
    %v75 = vlaneseq
    %v76 = vshrl.u32 %v75, 7
    %v77 = vsub.s32 5, %v76
    %v78 = vrot.slane %v53, %v77
    %v79 = vlaneseq
    %v80 = vshrl.u32 %v79, 7
    %v81 = vsub.s32 6, %v80
    %v82 = vrot.slane %v53, %v81
    %v110 = vunpack.c.l.b16 %v33
    %v111 = vunpack.c.h.b16 %v33
    %v112 = vunpack.c.l.b16 %v34
    %v113 = vunpack.c.h.b16 %v34
    %v114 = vunpack.c.l.b16 %v35
    %v115 = vunpack.c.h.b16 %v35
    %v116 = vunpack.c.l.b16 %v36
    %v117 = vunpack.c.l.b16 %v37
    %v118 = vunpack.c.h.b16 %v37
    %v119 = vunpack.c.l.b16 %v38
    %v120 = vunpack.c.h.b16 %v38
    %v121 = vunpack.c.l.b16 %v39
    %v122 = vunpack.c.h.b16 %v39
    %v123 = vunpack.c.l.b16 %v40
    %v124 = vunpack.c.l.b16 %v41
    %v125 = vunpack.c.h.b16 %v41
    %v126 = vunpack.c.l.b16 %v42
    %v127 = vunpack.c.h.b16 %v42
    %v128 = vunpack.c.l.b16 %v43
    %v129 = vunpack.c.h.b16 %v43
    %v130 = vunpack.c.l.b16 %v44
    %v131 = vunpack.c.l.b16 %v45
    %v132 = vunpack.c.h.b16 %v45
    %v133 = vunpack.c.l.b16 %v46
    %v134 = vunpack.c.h.b16 %v46
    %v135 = vunpack.c.l.b16 %v47
    %v136 = vunpack.c.h.b16 %v47
    %v137 = vunpack.c.l.b16 %v48
    %v138 = vunpack.c.l.b16 %v49
    %v139 = vunpack.c.h.b16 %v49
    %v140 = vunpack.c.l.b16 %v50
    %v141 = vunpack.c.h.b16 %v50
    %v142 = vunpack.c.l.b16 %v51
    %v143 = vunpack.c.h.b16 %v51
    %v144 = vunpack.c.l.b16 %v52
    %v145 = vpack.c.b16 %v117, %v110
    %v146 = vpack.c.b16 %v118, %v111
    %v147 = vpack.c.b16 %v119, %v112
    %v148 = vpack.c.b16 %v120, %v113
    %v149 = vpack.c.b16 %v121, %v114
    %v150 = vpack.c.b16 %v122, %v115
    %v151 = vpack.c.b16 %v123, %v116
    %v152 = vpack.c.b16 %v131, %v124
    %v153 = vpack.c.b16 %v132, %v125
    %v154 = vpack.c.b16 %v133, %v126
    %v155 = vpack.c.b16 %v134, %v127
    %v156 = vpack.c.b16 %v135, %v128
    %v157 = vpack.c.b16 %v136, %v129
    %v158 = vpack.c.b16 %v137, %v130
    %v159 = vpack.c.b16 %v138, %v138
    %v160 = vpack.c.b16 %v139, %v139
    %v161 = vpack.c.b16 %v140, %v140
    %v162 = vpack.c.b16 %v141, %v141
    %v163 = vpack.c.b16 %v142, %v142
    %v164 = vpack.c.b16 %v143, %v143
    %v165 = vpack.c.b16 %v144, %v144
    %vm180 = vcmask 293888
    %v182 = vsel %vm180, %v32, 0
    %vm184 = vcmask 1041408
    %v186 = vsel %vm184, %v159, 0
    %v189 = vsel %vm184, %v160, 0
    %v192 = vsel %vm184, %v161, 0
    %v195 = vsel %vm184, %v162, 0
    %v198 = vsel %vm184, %v163, 0
    %v201 = vsel %vm184, %v164, 0
    %v204 = vsel %vm184, %v165, 0
    %206 = vmatprep.subr.bf16.mxu0 %v146
    %207 = vmatpush1.bf16.msra.mxu0 %v145
    %208 = vmatprep.subr.bf16.mxu0 %v153
    %209 = vmatpush1.bf16.msra.mxu0 %v152
    %210 = vmatprep.subr.bf16.mxu0 %v189
    %211 = vmatpush1.bf16.msra.mxu0 %v186
    %212 = vmatprep.subr.bf16.mxu0 0
    %213 = vmatpush1.bf16.msra.mxu0 0
    %214 = vmatprep.subr.bf16.mxu0 0
    %215 = vmatpush1.bf16.msra.mxu0 0
    %216 = vmatprep.subr.bf16.mxu0 0
    %217 = vmatpush1.bf16.msra.mxu0 0
    %218 = vmatprep.subr.bf16.mxu0 0
    %219 = vmatpush1.bf16.msra.mxu0 0
    %220 = vmatprep.subr.bf16.mxu0 0
    %221 = vmatpush1.bf16.msra.mxu0 0
    %222 = vmatprep.subr.bf16.mxu0 0
    %223 = vmatpush1.bf16.msra.mxu0 0
    %224 = vmatprep.subr.bf16.mxu0 0
    %225 = vmatpush1.bf16.msra.mxu0 0
    %226 = vmatprep.subr.bf16.mxu0 0
    %227 = vmatpush1.bf16.msra.mxu0 0
    %228 = vmatprep.subr.bf16.mxu0 0
    %229 = vmatpush1.bf16.msra.mxu0 0
    %230 = vmatprep.subr.bf16.mxu0 0
    %231 = vmatpush1.bf16.msra.mxu0 0
    %232 = vmatprep.subr.bf16.mxu0 0
    %233 = vmatpush1.bf16.msra.mxu0 0
    %234 = vmatprep.subr.bf16.mxu0 0
    %235 = vmatpush1.bf16.msra.mxu0 0
    %236 = vmatprep.subr.bf16.mxu0 0
    %237 = vmatpush1.bf16.msra.mxu0 0
    %238 = vmatprep.mubr.bf16.mxu0 0
    %239 = vmatmul.mubr.bf16.gmra.mrb[0].mxu0 %v182
    %v240 = vpop.f32.mrb[0].mxu0
    %v241 = vadd.f32 %v58, %v240
    %v242 = vpop.f32.mrb[0].mxu0
    %v243 = vadd.f32 %v62, %v242
    %v244 = vpop.f32.mrb[0].mxu0
    %v245 = vpop.f32.mrb[0].mxu0
    %246 = vdwg.mxu0
    %247 = vmatprep.subr.bf16.mxu0 %v148
    %248 = vmatpush1.bf16.msra.mxu0 %v147
    %249 = vmatprep.subr.bf16.mxu0 %v155
    %250 = vmatpush1.bf16.msra.mxu0 %v154
    %251 = vmatprep.subr.bf16.mxu0 %v195
    %252 = vmatpush1.bf16.msra.mxu0 %v192
    %253 = vmatprep.subr.bf16.mxu0 0
    %254 = vmatpush1.bf16.msra.mxu0 0
    %255 = vmatprep.subr.bf16.mxu0 0
    %256 = vmatpush1.bf16.msra.mxu0 0
    %257 = vmatprep.subr.bf16.mxu0 0
    %258 = vmatpush1.bf16.msra.mxu0 0
    %259 = vmatprep.subr.bf16.mxu0 0
    %260 = vmatpush1.bf16.msra.mxu0 0
    %261 = vmatprep.subr.bf16.mxu0 0
    %262 = vmatpush1.bf16.msra.mxu0 0
    %263 = vmatprep.subr.bf16.mxu0 0
    %264 = vmatpush1.bf16.msra.mxu0 0
    %265 = vmatprep.subr.bf16.mxu0 0
    %266 = vmatpush1.bf16.msra.mxu0 0
    %267 = vmatprep.subr.bf16.mxu0 0
    %268 = vmatpush1.bf16.msra.mxu0 0
    %269 = vmatprep.subr.bf16.mxu0 0
    %270 = vmatpush1.bf16.msra.mxu0 0
    %271 = vmatprep.subr.bf16.mxu0 0
    %272 = vmatpush1.bf16.msra.mxu0 0
    %273 = vmatprep.subr.bf16.mxu0 0
    %274 = vmatpush1.bf16.msra.mxu0 0
    %275 = vmatprep.subr.bf16.mxu0 0
    %276 = vmatpush1.bf16.msra.mxu0 0
    %277 = vmatprep.subr.bf16.mxu0 0
    %278 = vmatpush1.bf16.msra.mxu0 0
    %279 = vmatprep.mubr.bf16.mxu0 0
    %280 = vmatmul.mubr.bf16.gmra.mrb[0].mxu0 %v182
    %v281 = vpop.f32.mrb[0].mxu0
    %v282 = vadd.f32 %v66, %v281
    %v283 = vpop.f32.mrb[0].mxu0
    %v284 = vadd.f32 %v70, %v283
    %v285 = vpop.f32.mrb[0].mxu0
    %v286 = vpop.f32.mrb[0].mxu0
    %287 = vdwg.mxu0
    %288 = vmatprep.subr.bf16.mxu0 %v150
    %289 = vmatpush1.bf16.msra.mxu0 %v149
    %290 = vmatprep.subr.bf16.mxu0 %v157
    %291 = vmatpush1.bf16.msra.mxu0 %v156
    %292 = vmatprep.subr.bf16.mxu0 %v201
    %293 = vmatpush1.bf16.msra.mxu0 %v198
    %294 = vmatprep.subr.bf16.mxu0 0
    %295 = vmatpush1.bf16.msra.mxu0 0
    %296 = vmatprep.subr.bf16.mxu0 0
    %297 = vmatpush1.bf16.msra.mxu0 0
    %298 = vmatprep.subr.bf16.mxu0 0
    %299 = vmatpush1.bf16.msra.mxu0 0
    %300 = vmatprep.subr.bf16.mxu0 0
    %301 = vmatpush1.bf16.msra.mxu0 0
    %302 = vmatprep.subr.bf16.mxu0 0
    %303 = vmatpush1.bf16.msra.mxu0 0
    %304 = vmatprep.subr.bf16.mxu0 0
    %305 = vmatpush1.bf16.msra.mxu0 0
    %306 = vmatprep.subr.bf16.mxu0 0
    %307 = vmatpush1.bf16.msra.mxu0 0
    %308 = vmatprep.subr.bf16.mxu0 0
    %309 = vmatpush1.bf16.msra.mxu0 0
    %310 = vmatprep.subr.bf16.mxu0 0
    %311 = vmatpush1.bf16.msra.mxu0 0
    %312 = vmatprep.subr.bf16.mxu0 0
    %313 = vmatpush1.bf16.msra.mxu0 0
    %314 = vmatprep.subr.bf16.mxu0 0
    %315 = vmatpush1.bf16.msra.mxu0 0
    %316 = vmatprep.subr.bf16.mxu0 0
    %317 = vmatpush1.bf16.msra.mxu0 0
    %318 = vmatprep.subr.bf16.mxu0 0
    %319 = vmatpush1.bf16.msra.mxu0 0
    %320 = vmatprep.mubr.bf16.mxu0 0
    %321 = vmatmul.mubr.bf16.gmra.mrb[0].mxu0 %v182
    %v322 = vpop.f32.mrb[0].mxu0
    %v323 = vadd.f32 %v74, %v322
    %v324 = vpop.f32.mrb[0].mxu0
    %v325 = vadd.f32 %v78, %v324
    %v326 = vpop.f32.mrb[0].mxu0
    %v327 = vpop.f32.mrb[0].mxu0
    %328 = vdwg.mxu0
    %329 = vmatprep.subr.bf16.mxu0 0
    %330 = vmatpush1.bf16.msra.mxu0 %v151
    %331 = vmatprep.subr.bf16.mxu0 0
    %332 = vmatpush1.bf16.msra.mxu0 %v158
    %333 = vmatprep.subr.bf16.mxu0 0
    %334 = vmatpush1.bf16.msra.mxu0 %v204
    %335 = vmatprep.subr.bf16.mxu0 0
    %336 = vmatpush1.bf16.msra.mxu0 0
    %337 = vmatprep.subr.bf16.mxu0 0
    %338 = vmatpush1.bf16.msra.mxu0 0
    %339 = vmatprep.subr.bf16.mxu0 0
    %340 = vmatpush1.bf16.msra.mxu0 0
    %341 = vmatprep.subr.bf16.mxu0 0
    %342 = vmatpush1.bf16.msra.mxu0 0
    %343 = vmatprep.subr.bf16.mxu0 0
    %344 = vmatpush1.bf16.msra.mxu0 0
    %345 = vmatprep.subr.bf16.mxu0 0
    %346 = vmatpush1.bf16.msra.mxu0 0
    %347 = vmatprep.subr.bf16.mxu0 0
    %348 = vmatpush1.bf16.msra.mxu0 0
    %349 = vmatprep.subr.bf16.mxu0 0
    %350 = vmatpush1.bf16.msra.mxu0 0
    %351 = vmatprep.subr.bf16.mxu0 0
    %352 = vmatpush1.bf16.msra.mxu0 0
    %353 = vmatprep.subr.bf16.mxu0 0
    %354 = vmatpush1.bf16.msra.mxu0 0
    %355 = vmatprep.subr.bf16.mxu0 0
    %356 = vmatpush1.bf16.msra.mxu0 0
    %357 = vmatprep.subr.bf16.mxu0 0
    %358 = vmatpush1.bf16.msra.mxu0 0
    %359 = vmatprep.subr.bf16.mxu0 0
    %360 = vmatpush1.bf16.msra.mxu0 0
    %361 = vmatprep.mubr.bf16.mxu0 0
    %362 = vmatmul.mubr.bf16.gmra.mrb[0].mxu0 %v182
    %v363 = vpop.f32.mrb[0].mxu0
    %v364 = vadd.f32 %v82, %v363
    %v365 = vpop.f32.mrb[0].mxu0
    %v366 = vpop.f32.mrb[0].mxu0
    %v367 = vpop.f32.mrb[0].mxu0
    %368 = vdwg.mxu0
    %v376 = vcombine.low %v241, %v243
    %v377 = vcombine.low %v282, %v284
    %v379 = vunpack.c.l.s4 1983009808
    %v380 = vunpack.c.0.s8 %v379
    %v381 = vlaneseq
    %v382 = vshrl.u32 %v381, 7
    %v383 = vsub.s32 %v380, %v382
    %v384 = vrot.slane %v376, %v383
    %v386 = vunpack.c.l.s4 1983009808
    %v387 = vunpack.c.0.s8 %v386
    %v388 = vlaneseq
    %v389 = vshrl.u32 %v388, 7
    %v390 = vsub.s32 %v387, %v389
    %v391 = vrot.slane %v377, %v390
    %v392 = vcombine.low %v384, %v391
    %v393 = vcombine.low %v323, %v325
    %v395 = vunpack.c.l.s4 1983009808
    %v396 = vunpack.c.0.s8 %v395
    %v397 = vlaneseq
    %v398 = vshrl.u32 %v397, 7
    %v399 = vsub.s32 %v396, %v398
    %v400 = vrot.slane %v393, %v399
    %v402 = vunpack.c.l.s4 1983009808
    %v403 = vunpack.c.0.s8 %v402
    %v404 = vlaneseq
    %v405 = vshrl.u32 %v404, 7
    %v406 = vsub.s32 %v403, %v405
    %v407 = vrot.slane %v364, %v406
    %v408 = vcombine.low %v400, %v407
    %411 = vst [vmem:[#allocation7] sm:$0xff] %v392
    %412 = vst [vmem:[#allocation7 + $0x8] sm:$0x3f] %v408
    // Predicated region
    $region18: #{tpu_custom_call.1} parent=1 // pred_check
      _
    $region19: #{tpu_custom_call.1} parent=1 // pred_check_branch
      %414 = sbr.rel (0) target = $region21
    $region20: #{tpu_custom_call.1} parent=1 // pred_region
      %s416 = ssub.s32 224, 224
      %417 = vsyncadd [#allocation6], %s416
      %s419 = sshll.u32 [#allocation7], 4
      %s420 = int_to_ptr.vmem [resolvable:$true] %s419
      %422 = dma.vmem_to_hbm [thread:$0]  %s420, 224, %s4, [#allocation6]
    $region21: #{tpu_custom_call.1} parent=1 // pred_fallthru
      _
    // Predicated region
    $region22: #{tpu_custom_call.1} parent=1 // pred_check
      _
    $region23: #{tpu_custom_call.1} parent=1 // pred_check_branch
      %424 = sbr.rel (0) target = $region25
    $region24: #{tpu_custom_call.1} parent=1 // pred_region
      %425 = dma.done [#allocation6], 224
    $region25: #{tpu_custom_call.1} parent=1 // pred_fallthru
      _
    %426 = vsyncpa [#allocation5], 1
    %427 = vsyncpa [#allocation6], 1

</llo_original>
